<compile_context>
chip_gen: v7x
topology: tpu7x:2x2x1
jax: 0.10.0
libtpu: 0.0.40
codegen_flags: <defaults>
</compile_context>

<pallas_src>
import math

import jax
import jax.numpy as jnp
from jax import lax
from jax.experimental import pallas as pl
from jax.experimental.pallas import tpu as pltpu


def _multi_unsqueeze(x, target_dim):
    while x.ndim < target_dim:
        x = x[..., None]
    return x


def _round_up(v, m):
    return ((v + m - 1) // m) * m


def _tpu_hw():
    """Best-effort (VMEM bytes, tensorcores-per-chip) query with safe fallbacks."""
    vmem = 64 << 20
    cores = 1
    try:
        vmem = int(pltpu.get_tpu_info().vmem_capacity_bytes)
    except Exception:
        pass
    try:
        kind = jax.devices()[0].device_kind.lower()
        if "v7" in kind:
            cores = 2
            vmem = min(vmem, 64 << 20)   # 64 MiB per TC on v7x
    except Exception:
        pass
    return vmem, cores


def _fit_tiles(B, IN_p, OUT_p, x_dsz, y_dsz, budget, num_cores, tb_cap, tn_cap):
    """Pick (TB, TN): lane-dense TN dividing OUT_p, TB a multiple of 8, within VMEM budget."""

    def footprint(tb, tn):
        return (2 * tb * IN_p * x_dsz        # X tile, double buffered
                + 2 * tn * IN_p * x_dsz      # W tile, double buffered
                + 2 * tb * tn * y_dsz        # Y tile, double buffered
                + 8 * tn * 4                 # bias/mean/std tiles + scratch
                + (64 << 10))                # slack

    tb_full = min(tb_cap, _round_up(B, 8))
    tn_all = [t for t in range(128, OUT_p + 1, 128) if OUT_p % t == 0 and t <= tn_cap]
    if not tn_all:
        tn_all = [128]
    tn_all.sort(reverse=True)   # prefer large TN: fewer X re-reads from HBM
    if num_cores >= 2:
        # Keep both TensorCores busy on v7x: prefer >=2 steps on the parallel OUT axis.
        split = [t for t in tn_all if OUT_p // t >= 2]
        if split:
            tn_all = split + [t for t in tn_all if t not in split]

    best = None
    for tn in tn_all:
        tb = tb_full
        while tb > 8 and footprint(tb, tn) > budget:
            tb = max(8, ((tb // 2) + 7) // 8 * 8)
        if footprint(tb, tn) > budget:
            continue
        if best is None or tb > best[0]:
            best = (tb, tn)
        if tb == tb_full:
            break
    if best is None:
        # TODO(synk): add an inner K (IN) grid axis with an f32 accumulator for very
        # large IN; fall back to minimal tiles here.
        best = (8, tn_all[-1])
    return best


def _make_kernel(b_total):
    """Build the kernel with the (static) global batch size baked in."""

    def kernel(x_ref, w_ref, bias_ref, y_ref, mean_ref, std_ref, sum_sc, sq_sc):
        b = pl.program_id(1)

        @pl.when(b == 0)
        def _():
            sum_sc[...] = jnp.zeros_like(sum_sc)
            sq_sc[...] = jnp.zeros_like(sq_sc)

        x = x_ref[...]                                   # (TB, IN_p), bf16 by default
        w = w_ref[...]                                   # (TN, IN_p), resident over b
        # Contract the IN dims directly -- no materialized transpose of W.
        z = lax.dot_general(
            x, w,
            dimension_numbers=(((1,), (1,)), ((), ())),
            preferred_element_type=jnp.float32)          # (TB, TN) f32
        y_ref[...] = (z + bias_ref[...]).astype(y_ref.dtype)

        # Zero-padded batch rows of X give exactly-zero rows of z, so they contribute
        # nothing to either accumulator -> no mask needed.  Bias is added to the mean
        # at finalize (variance is bias-invariant), which also reduces cancellation.
        sum_sc[...] += jnp.sum(z, axis=0, keepdims=True)
        sq_sc[...] += jnp.sum(z * z, axis=0, keepdims=True)

        @pl.when(b == pl.num_programs(1) - 1)
        def _():
            n = jnp.float32(b_total)
            denom = jnp.float32(max(b_total - 1, 1))     # unbiased (N-1), guarded for B==1
            mean_z = sum_sc[...] / n
            var = jnp.maximum(sq_sc[...] - n * mean_z * mean_z, 0.0) / denom
            mean_ref[...] = mean_z + bias_ref[...]
            std_ref[...] = jnp.sqrt(var)

    return kernel


def linear_normalizer_forward(x, weight, bias, *, lr, dim, eps=1e-5,
                              training=True, use_bf16_mxu=True,
                              tb_cap=512, tn_cap=None):
    """Pallas-backed forward of LinearNormalizer.

    Returns (Y, new_weight, new_bias, Y_mean, Y_std_clamped).
    In eval mode (training=False), params are returned unchanged and stats are None.
    Set use_bf16_mxu=False for exact-f32 MXU operands (slower, tighter numerics).
    """
    assert list(dim) == [0], "kernel implements the standard dim=[0] reduction"
    B, IN = x.shape
    OUT = weight.shape[0]

    # --- pad to TPU-friendly shapes --------------------------------------
    LANE = 128
    IN_p = _round_up(IN, LANE)
    OUT_p = _round_up(OUT, LANE)

    mxu_dtype = jnp.bfloat16 if use_bf16_mxu else x.dtype
    x_dsz = jnp.dtype(mxu_dtype).itemsize
    y_dsz = jnp.dtype(x.dtype).itemsize

    vmem_bytes, num_cores = _tpu_hw()
    vmem_limit = max(32 << 20, min(int(vmem_bytes * 0.75), 96 << 20))
    budget = int(vmem_limit * 0.85)

    tn_cap_eff = OUT_p if tn_cap is None else max(128, tn_cap)
    TB, TN = _fit_tiles(B, IN_p, OUT_p, x_dsz, y_dsz, budget, num_cores,
                        tb_cap=max(8, tb_cap), tn_cap=tn_cap_eff)
    B_p = _round_up(B, TB)

    x_p = jnp.pad(x, ((0, B_p - B), (0, IN_p - IN))).astype(mxu_dtype)
    w_p = jnp.pad(weight, ((0, OUT_p - OUT), (0, IN_p - IN))).astype(mxu_dtype)
    bias_p = jnp.pad(bias.astype(jnp.float32), (0, OUT_p - OUT)).reshape(1, OUT_p)

    grid = (OUT_p // TN, B_p // TB)   # (parallel OUT tiles, arbitrary B tiles)
    kernel = _make_kernel(B)

    cost = pl.CostEstimate(
        flops=2 * B_p * IN_p * OUT_p,
        transcendentals=0,
        bytes_accessed=((OUT_p // TN) * B_p * IN_p * x_dsz     # X re-read per OUT tile
                        + OUT_p * IN_p * x_dsz                 # W
                        + B_p * OUT_p * y_dsz                  # Y
                        + 3 * OUT_p * 4))                      # bias / mean / std

    y_p, mean_p, std_p = pl.pallas_call(
        kernel,
        out_shape=(
            jax.ShapeDtypeStruct((B_p, OUT_p), x.dtype),
            jax.ShapeDtypeStruct((1, OUT_p), jnp.float32),
            jax.ShapeDtypeStruct((1, OUT_p), jnp.float32),
        ),
        grid=grid,
        in_specs=[
            pl.BlockSpec((TB, IN_p), lambda o, b: (b, 0)),   # X: new tile per B step
            pl.BlockSpec((TN, IN_p), lambda o, b: (o, 0)),   # W: resident across B sweep
            pl.BlockSpec((1, TN), lambda o, b: (0, o)),      # bias
        ],
        out_specs=(
            pl.BlockSpec((TB, TN), lambda o, b: (b, o)),     # Y
            pl.BlockSpec((1, TN), lambda o, b: (0, o)),      # mean (written at last B step)
            pl.BlockSpec((1, TN), lambda o, b: (0, o)),      # std  (written at last B step)
        ),
        scratch_shapes=[
            pltpu.VMEM((1, TN), jnp.float32),                # running sum of z
            pltpu.VMEM((1, TN), jnp.float32),                # running sum of z^2
        ],
        compiler_params=pltpu.CompilerParams(
            dimension_semantics=("parallel", "arbitrary"),
            vmem_limit_bytes=int(vmem_limit)),
        cost_estimate=cost,
    )(x_p, w_p, bias_p)

    y = y_p[:B, :OUT]

    if not training:
        return y, weight, bias, None, None

    y_mean = mean_p[0, :OUT]                                   # (OUT,)
    y_std = _multi_unsqueeze(std_p[0, :OUT], weight.ndim)      # (OUT, 1)
    y_std = jnp.maximum(y_std, eps)                            # torch.clamp(min=eps)

    # TODO(synk): PyTorch mutates lin.bias.data / lin.weight.data in place and caches
    # self.Y_mean / self.Y_std; here the updated params and stats are returned.
    new_bias = bias - y_mean * lr                              # bias.data -= Y_mean * lr
    new_weight = weight / (y_std ** lr)                        # weight.data /= Y_std ** lr
    return y, new_weight, new_bias, y_mean, y_std


if __name__ == "__main__":
    key = jax.random.PRNGKey(0)
    kx, kw, kb = jax.random.split(key, 3)

    # Small, deliberately unaligned shapes (exercise padding on B/IN/OUT).
    B, IN, OUT = 20, 96, 200
    lr, eps = 0.1, 1e-5

    x = jax.random.normal(kx, (B, IN), dtype=jnp.float32)
    bound = 1.0 / math.sqrt(IN)
    weight = jax.random.uniform(kw, (OUT, IN), minval=-bound, maxval=bound,
                                dtype=jnp.float32)
    bias = jax.random.uniform(kb, (OUT,), minval=-bound, maxval=bound,
                              dtype=jnp.float32)

    def reference(xr, wr, br):
        y = jnp.dot(xr, wr.T, precision=jax.lax.Precision.HIGHEST) + br
        mean = jnp.mean(y, axis=0)
        std = jnp.std(y, axis=0, ddof=1)
        return y, mean, jnp.maximum(std[:, None], eps)

    # --- Config A: default path (bf16 MXU operands, large tiles) ------------
    y, new_w, new_b, y_mean, y_std = linear_normalizer_forward(
        x, weight, bias, lr=lr, dim=[0], eps=eps, training=True)
    jax.block_until_ready((y, new_w, new_b, y_mean, y_std))

    xb = x.astype(jnp.bfloat16).astype(jnp.float32)
    wb = weight.astype(jnp.bfloat16).astype(jnp.float32)
    y_ref, mean_ref, std_ref = reference(xb, wb, bias)
    assert jnp.allclose(y, y_ref, atol=5e-3, rtol=5e-3)
    assert jnp.allclose(y_mean, mean_ref, atol=5e-3, rtol=5e-3)
    assert jnp.allclose(y_std, std_ref, atol=5e-3, rtol=5e-3)
    assert jnp.allclose(new_b, bias - mean_ref * lr, atol=5e-3, rtol=5e-3)
    assert jnp.allclose(new_w, weight / (std_ref ** lr), atol=5e-3, rtol=5e-3)

    # --- Config B: f32 operands, forced small tiles (multi-step (OUT, B) grid
    #     exercises the init / accumulate / finalize path: grid = (2, 3)) ----
    y2, new_w2, new_b2, y_mean2, y_std2 = linear_normalizer_forward(
        x, weight, bias, lr=lr, dim=[0], eps=eps, training=True,
        use_bf16_mxu=False, tb_cap=8, tn_cap=128)
    jax.block_until_ready((y2, new_w2, new_b2, y_mean2, y_std2))

    y_ref2, mean_ref2, std_ref2 = reference(x, weight, bias)
    assert jnp.allclose(y2, y_ref2, atol=1e-4, rtol=1e-4)
    assert jnp.allclose(y_mean2, mean_ref2, atol=1e-4, rtol=1e-4)
    assert jnp.allclose(y_std2, std_ref2, atol=1e-4, rtol=1e-4)
    assert jnp.allclose(new_b2, bias - mean_ref2 * lr, atol=1e-4, rtol=1e-4)
    assert jnp.allclose(new_w2, weight / (std_ref2 ** lr), atol=1e-4, rtol=1e-4)

    # --- Eval mode: params unchanged, no stats -------------------------------
    y3, w3, b3, m3, s3 = linear_normalizer_forward(
        x, weight, bias, lr=lr, dim=[0], eps=eps, training=False)
    jax.block_until_ready(y3)
    assert m3 is None and s3 is None
    assert jnp.allclose(w3, weight) and jnp.allclose(b3, bias)

    print("KERNEL_OK")
</pallas_src>

<mosaic_0001>
module attributes {stable_mosaic.version = 11 : i64} {
  func.func @kernel(%arg0: i32, %arg1: i32, %arg2: memref<24x128xbf16, #tpu.memory_space<vmem>>, %arg3: memref<256x128xbf16, #tpu.memory_space<vmem>>, %arg4: memref<1x256xf32, #tpu.memory_space<vmem>>, %arg5: memref<24x256xf32, #tpu.memory_space<vmem>>, %arg6: memref<1x256xf32, #tpu.memory_space<vmem>>, %arg7: memref<1x256xf32, #tpu.memory_space<vmem>>, %arg8: memref<1x256xf32, #tpu.memory_space<vmem>>, %arg9: memref<1x256xf32, #tpu.memory_space<vmem>>) attributes {dimension_semantics = [#tpu.dimension_semantics<parallel>, #tpu.dimension_semantics<arbitrary>], iteration_bounds = array<i64: 1, 1>, scalar_prefetch = 0 : i64, scratch_operands = 2 : i64, tpu.core_type = #tpu.core_type<tc>, window_params = [{transform_indices = @transform_0, window_bounds = array<i64: 24, 128>}, {transform_indices = @transform_1, window_bounds = array<i64: 256, 128>}, {transform_indices = @transform_2, window_bounds = array<i64: 1, 256>}, {transform_indices = @transform_3, window_bounds = array<i64: 24, 256>}, {transform_indices = @transform_4, window_bounds = array<i64: 1, 256>}, {transform_indices = @transform_5, window_bounds = array<i64: 1, 256>}]} {
    %c0_i32 = arith.constant 0 : i32
    %0 = arith.cmpi eq, %arg1, %c0_i32 : i32
    %1 = arith.extui %0 : i1 to i32
    %c0_i32_0 = arith.constant 0 : i32
    %2 = arith.cmpi ne, %1, %c0_i32_0 : i32
    scf.if %2 {
      %cst_20 = arith.constant 0.000000e+00 : f32
      %24 = vector.broadcast %cst_20 : f32 to vector<1x256xf32>
      %c0_21 = arith.constant 0 : index
      %c0_22 = arith.constant 0 : index
      %25 = vector.load %arg8[%c0_21, %c0_22] : memref<1x256xf32, #tpu.memory_space<vmem>>, vector<1x256xf32>
      tpu.vector_store %arg8[%c0_21, %c0_22], %24 {strides = array<i32>} : memref<1x256xf32, #tpu.memory_space<vmem>>, vector<1x256xf32>,
      %cst_23 = arith.constant 0.000000e+00 : f32
      %26 = vector.broadcast %cst_23 : f32 to vector<1x256xf32>
      %c0_24 = arith.constant 0 : index
      %c0_25 = arith.constant 0 : index
      %27 = vector.load %arg9[%c0_24, %c0_25] : memref<1x256xf32, #tpu.memory_space<vmem>>, vector<1x256xf32>
      tpu.vector_store %arg9[%c0_24, %c0_25], %26 {strides = array<i32>} : memref<1x256xf32, #tpu.memory_space<vmem>>, vector<1x256xf32>,
    } else {
    }
    %c0 = arith.constant 0 : index
    %c0_1 = arith.constant 0 : index
    %3 = vector.load %arg2[%c0, %c0_1] : memref<24x128xbf16, #tpu.memory_space<vmem>>, vector<24x128xbf16>
    %c0_2 = arith.constant 0 : index
    %c0_3 = arith.constant 0 : index
    %4 = vector.load %arg3[%c0_2, %c0_3] : memref<256x128xbf16, #tpu.memory_space<vmem>>, vector<256x128xbf16>
    %cst = arith.constant dense<0.000000e+00> : vector<24x256xf32>
    %5 = tpu.matmul %3, %4, %cst {dimension_numbers = #tpu.dot_dimension_numbers<[1], [1], [0], [0], [0, 0, 1, 0], [], []>} : vector<24x128xbf16>, vector<256x128xbf16>, vector<24x256xf32> -> vector<24x256xf32>
    %c0_4 = arith.constant 0 : index
    %c0_5 = arith.constant 0 : index
    %6 = vector.load %arg4[%c0_4, %c0_5] : memref<1x256xf32, #tpu.memory_space<vmem>>, vector<1x256xf32>
    %7 = vector.broadcast %6 : vector<1x256xf32> to vector<24x256xf32>
    %8 = arith.addf %5, %7 : vector<24x256xf32>
    %c0_6 = arith.constant 0 : index
    %c0_7 = arith.constant 0 : index
    %9 = vector.load %arg5[%c0_6, %c0_7] : memref<24x256xf32, #tpu.memory_space<vmem>>, vector<24x256xf32>
    tpu.vector_store %arg5[%c0_6, %c0_7], %8 {strides = array<i32>} : memref<24x256xf32, #tpu.memory_space<vmem>>, vector<24x256xf32>,
    %c0_8 = arith.constant 0 : index
    %c0_9 = arith.constant 0 : index
    %10 = vector.load %arg8[%c0_8, %c0_9] : memref<1x256xf32, #tpu.memory_space<vmem>>, vector<1x256xf32>
    %cst_10 = arith.constant dense<0.000000e+00> : vector<256xf32>
    %11 = vector.multi_reduction <add>, %5, %cst_10 [0] : vector<24x256xf32> to vector<256xf32>
    %12 = vector.shape_cast %11 : vector<256xf32> to vector<1x256xf32>
    %13 = arith.addf %10, %12 : vector<1x256xf32>
    %c0_11 = arith.constant 0 : index
    %c0_12 = arith.constant 0 : index
    %14 = vector.load %arg8[%c0_11, %c0_12] : memref<1x256xf32, #tpu.memory_space<vmem>>, vector<1x256xf32>
    tpu.vector_store %arg8[%c0_11, %c0_12], %13 {strides = array<i32>} : memref<1x256xf32, #tpu.memory_space<vmem>>, vector<1x256xf32>,
    %c0_13 = arith.constant 0 : index
    %c0_14 = arith.constant 0 : index
    %15 = vector.load %arg9[%c0_13, %c0_14] : memref<1x256xf32, #tpu.memory_space<vmem>>, vector<1x256xf32>
    %16 = arith.mulf %5, %5 : vector<24x256xf32>
    %cst_15 = arith.constant dense<0.000000e+00> : vector<256xf32>
    %17 = vector.multi_reduction <add>, %16, %cst_15 [0] : vector<24x256xf32> to vector<256xf32>
    %18 = vector.shape_cast %17 : vector<256xf32> to vector<1x256xf32>
    %19 = arith.addf %15, %18 : vector<1x256xf32>
    %c0_16 = arith.constant 0 : index
    %c0_17 = arith.constant 0 : index
    %20 = vector.load %arg9[%c0_16, %c0_17] : memref<1x256xf32, #tpu.memory_space<vmem>>, vector<1x256xf32>
    tpu.vector_store %arg9[%c0_16, %c0_17], %19 {strides = array<i32>} : memref<1x256xf32, #tpu.memory_space<vmem>>, vector<1x256xf32>,
    %c0_i32_18 = arith.constant 0 : i32
    %21 = arith.cmpi eq, %arg1, %c0_i32_18 : i32
    %22 = arith.extui %21 : i1 to i32
    %c0_i32_19 = arith.constant 0 : i32
    %23 = arith.cmpi ne, %22, %c0_i32_19 : i32
    scf.if %23 {
      %c0_20 = arith.constant 0 : index
      %c0_21 = arith.constant 0 : index
      %24 = vector.load %arg8[%c0_20, %c0_21] : memref<1x256xf32, #tpu.memory_space<vmem>>, vector<1x256xf32>
      %cst_22 = arith.constant 2.000000e+01 : f32
      %25 = vector.broadcast %cst_22 : f32 to vector<1x256xf32>
      %26 = arith.divf %24, %25 : vector<1x256xf32>
      %c0_23 = arith.constant 0 : index
      %c0_24 = arith.constant 0 : index
      %27 = vector.load %arg9[%c0_23, %c0_24] : memref<1x256xf32, #tpu.memory_space<vmem>>, vector<1x256xf32>
      %cst_25 = arith.constant 2.000000e+01 : f32
      %28 = vector.broadcast %cst_25 : f32 to vector<1x256xf32>
      %29 = arith.mulf %28, %26 : vector<1x256xf32>
      %30 = arith.mulf %29, %26 : vector<1x256xf32>
      %31 = arith.subf %27, %30 : vector<1x256xf32>
      %cst_26 = arith.constant 0.000000e+00 : f32
      %32 = vector.broadcast %cst_26 : f32 to vector<1x256xf32>
      %33 = arith.maximumf %31, %32 : vector<1x256xf32>
      %cst_27 = arith.constant 1.900000e+01 : f32
      %34 = vector.broadcast %cst_27 : f32 to vector<1x256xf32>
      %35 = arith.divf %33, %34 : vector<1x256xf32>
      %c0_28 = arith.constant 0 : index
      %c0_29 = arith.constant 0 : index
      %36 = vector.load %arg4[%c0_28, %c0_29] : memref<1x256xf32, #tpu.memory_space<vmem>>, vector<1x256xf32>
      %37 = arith.addf %26, %36 : vector<1x256xf32>
      %c0_30 = arith.constant 0 : index
      %c0_31 = arith.constant 0 : index
      %38 = vector.load %arg6[%c0_30, %c0_31] : memref<1x256xf32, #tpu.memory_space<vmem>>, vector<1x256xf32>
      tpu.vector_store %arg6[%c0_30, %c0_31], %37 {strides = array<i32>} : memref<1x256xf32, #tpu.memory_space<vmem>>, vector<1x256xf32>,
      %39 = math.sqrt %35 : vector<1x256xf32>
      %c0_32 = arith.constant 0 : index
      %c0_33 = arith.constant 0 : index
      %40 = vector.load %arg7[%c0_32, %c0_33] : memref<1x256xf32, #tpu.memory_space<vmem>>, vector<1x256xf32>
      tpu.vector_store %arg7[%c0_32, %c0_33], %39 {strides = array<i32>} : memref<1x256xf32, #tpu.memory_space<vmem>>, vector<1x256xf32>,
    } else {
    }
    return
  }
  func.func @transform_0(%arg0: i32, %arg1: i32) -> (i32, i32) {
    %c0_i32 = arith.constant 0 : i32
    %c0_i32_0 = arith.constant 0 : i32
    return %arg1, %c0_i32 : i32, i32
  }
  func.func @transform_1(%arg0: i32, %arg1: i32) -> (i32, i32) {
    %c0_i32 = arith.constant 0 : i32
    %c0_i32_0 = arith.constant 0 : i32
    return %arg0, %c0_i32 : i32, i32
  }
  func.func @transform_2(%arg0: i32, %arg1: i32) -> (i32, i32) {
    %c0_i32 = arith.constant 0 : i32
    %c0_i32_0 = arith.constant 0 : i32
    return %c0_i32, %arg0 : i32, i32
  }
  func.func @transform_3(%arg0: i32, %arg1: i32) -> (i32, i32) {
    %c0_i32 = arith.constant 0 : i32
    return %arg1, %arg0 : i32, i32
  }
  func.func @transform_4(%arg0: i32, %arg1: i32) -> (i32, i32) {
    %c0_i32 = arith.constant 0 : i32
    %c0_i32_0 = arith.constant 0 : i32
    return %c0_i32, %arg0 : i32, i32
  }
  func.func @transform_5(%arg0: i32, %arg1: i32) -> (i32, i32) {
    %c0_i32 = arith.constant 0 : i32
    %c0_i32_0 = arith.constant 0 : i32
    return %c0_i32, %arg0 : i32, i32
  }
}

</mosaic_0001>

<llo_original>
// kernel: tpu_custom_call.1
$region0: #{tpu_custom_call.1}
  #allocation0 [shape = 'u32[]', space=smem, size = 0x4, offset = 0x4, fixed_abs, tag = 'smem constant byte address 0x4 - core index']
  #allocation1 [shape = 'u32[144,128]{1,0:T(1,128)}', space=vmem, size = 0x12000, scoped, tag = 'internal scratch']
  #allocation2 [shape = 'f32[1,256]{1,0:T(1,128)}', space=vmem, size = 0x400, scoped, tag = 'scratch operand']
  #allocation3 [shape = 'f32[1,256]{1,0:T(1,128)}', space=vmem, size = 0x400, scoped, tag = 'scratch operand']
  %s0 = inlined_call_operand.hbm [shape: bf16[24,128], index: 0, kind: input, shape index: {}]
  %s1 = inlined_call_operand.hbm [shape: bf16[256,128], index: 1, kind: input, shape index: {}]
  %s2 = inlined_call_operand.vmem [shape: f32[1,256], index: 2, kind: input, shape index: {}]
  %s3 = inlined_call_operand.hbm [shape: f32[24,256], index: 3, kind: output, shape index: {0}]
  %s4 = inlined_call_operand.hbm [shape: f32[1,256], index: 4, kind: output, shape index: {1}]
  %s5 = inlined_call_operand.hbm [shape: f32[1,256], index: 5, kind: output, shape index: {2}]
  %6 = xla_tuple %s3, %s4, %s5
  %s7 = sld [smem:[#allocation0]]
  $region54: #{tpu_custom_call.1} parent=0
    _
  %s9 = ssub.s32 1, %s7
  %s10 = scalar_select 0, %s9, %s7
  $region1: #{tpu_custom_call.1} parent=0
    #allocation4 [shape = 'u8[6144]{0}', space=vmem, size = 0x1800, scoped, tag = 'input window, operand 0, single buffered']
    #allocation5 [shape = 's32[1]{0}', space=sflag, size = 0x4, scoped, tag = 'scoped memory for tpu_custom_call.1']
    #allocation6 [shape = 's32[1]{0}', space=sflag, size = 0x4, scoped, tag = 'scoped memory for tpu_custom_call.1']
    #allocation7 [shape = 'u8[65536]{0}', space=vmem, size = 0x10000, scoped, tag = 'input window, operand 1, single buffered']
    #allocation8 [shape = 's32[1]{0}', space=sflag, size = 0x4, scoped, tag = 'scoped memory for tpu_custom_call.1']
    #allocation9 [shape = 'u8[24576]{0}', space=vmem, size = 0x6000, scoped, tag = 'output window, operand 0, single buffered']
    #allocation10 [shape = 'u8[1024]{0}', space=vmem, size = 0x400, scoped, tag = 'output window, operand 1, single buffered']
    #allocation11 [shape = 's32[1]{0}', space=sflag, size = 0x4, scoped, tag = 'scoped memory for tpu_custom_call.1']
    #allocation12 [shape = 'u8[1024]{0}', space=vmem, size = 0x400, scoped, tag = 'output window, operand 2, single buffered']
    %11 = vsyncpa [#allocation5], 0
    %12 = vsyncpa [#allocation8], 0
    %13 = vsyncpa [#allocation6], 0
    %14 = vsyncpa [#allocation11], 0
    // Predicated region
    $region2: #{tpu_custom_call.1} parent=1 // pred_check
      _
    $region3: #{tpu_custom_call.1} parent=1 // pred_check_branch
      %16 = sbr.rel (0) target = $region5
    $region4: #{tpu_custom_call.1} parent=1 // pred_region
      %s18 = ssub.s32 192, 192
      %19 = vsyncadd [#allocation5], %s18
      %s20 = sshll.u32 [#allocation4], 4
      %s21 = int_to_ptr.vmem [resolvable:$true] %s20
      %26 = dma.hbm_to_vmem [thread:$0]  %s0, 192, %s21, [#allocation5], 64, 64, 4
    $region5: #{tpu_custom_call.1} parent=1 // pred_fallthru
      _
    // Predicated region
    $region6: #{tpu_custom_call.1} parent=1 // pred_check
      _
    $region7: #{tpu_custom_call.1} parent=1 // pred_check_branch
      %28 = sbr.rel (0) target = $region9
    $region8: #{tpu_custom_call.1} parent=1 // pred_region
      %s30 = ssub.s32 2048, 2048
      %31 = vsyncadd [#allocation8], %s30
      %s32 = sshll.u32 [#allocation7], 4
      %s33 = int_to_ptr.vmem [resolvable:$true] %s32
      %38 = dma.hbm_to_vmem [thread:$0]  %s1, 2048, %s33, [#allocation8], 64, 64, 4
    $region9: #{tpu_custom_call.1} parent=1 // pred_fallthru
      _
    // Predicated region
    $region10: #{tpu_custom_call.1} parent=1 // pred_check
      _
    $region11: #{tpu_custom_call.1} parent=1 // pred_check_branch
      %40 = sbr.rel (0) target = $region13
    $region12: #{tpu_custom_call.1} parent=1 // pred_region
      _
    $region13: #{tpu_custom_call.1} parent=1 // pred_fallthru
      _
    // Predicated region
    $region14: #{tpu_custom_call.1} parent=1 // pred_check
      _
    $region15: #{tpu_custom_call.1} parent=1 // pred_check_branch
      %42 = sbr.rel (0) target = $region17
    $region16: #{tpu_custom_call.1} parent=1 // pred_region
      %43 = dma.done [#allocation5], 192
    $region17: #{tpu_custom_call.1} parent=1 // pred_fallthru
      _
    // Predicated region
    $region18: #{tpu_custom_call.1} parent=1 // pred_check
      _
    $region19: #{tpu_custom_call.1} parent=1 // pred_check_branch
      %45 = sbr.rel (0) target = $region21
    $region20: #{tpu_custom_call.1} parent=1 // pred_region
      %46 = dma.done [#allocation8], 2048
    $region21: #{tpu_custom_call.1} parent=1 // pred_fallthru
      _
    %p48 = scmp.eq.s32.totalorder 0, 0
    // Predicated region
    $region22: #{tpu_custom_call.1} parent=1 // pred_check
      %p49 = pneg %p48
    $region23: #{tpu_custom_call.1} parent=1 // pred_check_branch
      %51 = sbr.rel (%p49) target = $region25
    $region24: #{tpu_custom_call.1} parent=1 // pred_region
      %v52 = vlaneseq
      %vm53 = vcmp.ge.s32.totalorder %v52, 0
      %vm54 = vcmp.lt.s32.totalorder %v52, 256
      %vm55 = vmand %vm53, %vm54
      %56 = vst.msk [vmem:[#allocation2] sm:$0x3] %vm55, 0.0
      %57 = vst.msk [vmem:[#allocation3] sm:$0x3] %vm55, 0.0
    $region25: #{tpu_custom_call.1} parent=1 // pred_fallthru
      _
    %v58 = vld [vmem:[#allocation4] sm:$0xf]
    %v59 = vld [vmem:[#allocation4 + $0x4] sm:$0xf]
    %v60 = vld [vmem:[#allocation4 + $0x8] sm:$0xf]
    %v61 = vld [vmem:[#allocation7] sm:$0xf]
    %v62 = vld [vmem:[#allocation7 + $0x4] sm:$0xf]
    %v63 = vld [vmem:[#allocation7 + $0x8] sm:$0xf]
    %v64 = vld [vmem:[#allocation7 + $0xc] sm:$0xf]
    %v65 = vld [vmem:[#allocation7 + $0x10] sm:$0xf]
    %v66 = vld [vmem:[#allocation7 + $0x14] sm:$0xf]
    %v67 = vld [vmem:[#allocation7 + $0x18] sm:$0xf]
    %v68 = vld [vmem:[#allocation7 + $0x1c] sm:$0xf]
    %v69 = vld [vmem:[#allocation7 + $0x20] sm:$0xf]
    %v70 = vld [vmem:[#allocation7 + $0x24] sm:$0xf]
    %v71 = vld [vmem:[#allocation7 + $0x28] sm:$0xf]
    %v72 = vld [vmem:[#allocation7 + $0x2c] sm:$0xf]
    %v73 = vld [vmem:[#allocation7 + $0x30] sm:$0xf]
    %v74 = vld [vmem:[#allocation7 + $0x34] sm:$0xf]
    %v75 = vld [vmem:[#allocation7 + $0x38] sm:$0xf]
    %v76 = vld [vmem:[#allocation7 + $0x3c] sm:$0xf]
    %v77 = vld [vmem:[#allocation7 + $0x40] sm:$0xf]
    %v78 = vld [vmem:[#allocation7 + $0x44] sm:$0xf]
    %v79 = vld [vmem:[#allocation7 + $0x48] sm:$0xf]
    %v80 = vld [vmem:[#allocation7 + $0x4c] sm:$0xf]
    %v81 = vld [vmem:[#allocation7 + $0x50] sm:$0xf]
    %v82 = vld [vmem:[#allocation7 + $0x54] sm:$0xf]
    %v83 = vld [vmem:[#allocation7 + $0x58] sm:$0xf]
    %v84 = vld [vmem:[#allocation7 + $0x5c] sm:$0xf]
    %v85 = vld [vmem:[#allocation7 + $0x60] sm:$0xf]
    %v86 = vld [vmem:[#allocation7 + $0x64] sm:$0xf]
    %v87 = vld [vmem:[#allocation7 + $0x68] sm:$0xf]
    %v88 = vld [vmem:[#allocation7 + $0x6c] sm:$0xf]
    %v89 = vld [vmem:[#allocation7 + $0x70] sm:$0xf]
    %v90 = vld [vmem:[#allocation7 + $0x74] sm:$0xf]
    %v91 = vld [vmem:[#allocation7 + $0x78] sm:$0xf]
    %v92 = vld [vmem:[#allocation7 + $0x7c] sm:$0xf]
    %v96 = vunpack.c.l.b16 %v58
    %v97 = vunpack.c.l.b16 %v59
    %v98 = vunpack.c.l.b16 %v60
    %v99 = vpack.c.b16 %v97, %v96
    %v100 = vpack.c.b16 %v98, %v98
    %v135 = vunpack.c.l.b16 %v61
    %v136 = vunpack.c.l.b16 %v62
    %v137 = vunpack.c.l.b16 %v63
    %v138 = vunpack.c.l.b16 %v64
    %v139 = vunpack.c.l.b16 %v65
    %v140 = vunpack.c.l.b16 %v66
    %v141 = vunpack.c.l.b16 %v67
    %v142 = vunpack.c.l.b16 %v68
    %v143 = vunpack.c.l.b16 %v69
    %v144 = vunpack.c.l.b16 %v70
    %v145 = vunpack.c.l.b16 %v71
    %v146 = vunpack.c.l.b16 %v72
    %v147 = vunpack.c.l.b16 %v73
    %v148 = vunpack.c.l.b16 %v74
    %v149 = vunpack.c.l.b16 %v75
    %v150 = vunpack.c.l.b16 %v76
    %v151 = vunpack.c.l.b16 %v77
    %v152 = vunpack.c.l.b16 %v78
    %v153 = vunpack.c.l.b16 %v79
    %v154 = vunpack.c.l.b16 %v80
    %v155 = vunpack.c.l.b16 %v81
    %v156 = vunpack.c.l.b16 %v82
    %v157 = vunpack.c.l.b16 %v83
    %v158 = vunpack.c.l.b16 %v84
    %v159 = vunpack.c.l.b16 %v85
    %v160 = vunpack.c.l.b16 %v86
    %v161 = vunpack.c.l.b16 %v87
    %v162 = vunpack.c.l.b16 %v88
    %v163 = vunpack.c.l.b16 %v89
    %v164 = vunpack.c.l.b16 %v90
    %v165 = vunpack.c.l.b16 %v91
    %v166 = vunpack.c.l.b16 %v92
    %v167 = vpack.c.b16 %v136, %v135
    %v168 = vpack.c.b16 %v138, %v137
    %v169 = vpack.c.b16 %v140, %v139
    %v170 = vpack.c.b16 %v142, %v141
    %v171 = vpack.c.b16 %v144, %v143
    %v172 = vpack.c.b16 %v146, %v145
    %v173 = vpack.c.b16 %v148, %v147
    %v174 = vpack.c.b16 %v150, %v149
    %v175 = vpack.c.b16 %v152, %v151
    %v176 = vpack.c.b16 %v154, %v153
    %v177 = vpack.c.b16 %v156, %v155
    %v178 = vpack.c.b16 %v158, %v157
    %v179 = vpack.c.b16 %v160, %v159
    %v180 = vpack.c.b16 %v162, %v161
    %v181 = vpack.c.b16 %v164, %v163
    %v182 = vpack.c.b16 %v166, %v165
    %199 = vmatprep.subr.bf16.mxu0 0
    %200 = vmatpush1.bf16.xpose.msra.mxu0 %v167
    %201 = vmatprep.subr.bf16.mxu0 0
    %202 = vmatpush1.bf16.xpose.msra.mxu0 %v168
    %203 = vmatprep.subr.bf16.mxu0 0
    %204 = vmatpush1.bf16.xpose.msra.mxu0 %v169
    %205 = vmatprep.subr.bf16.mxu0 0
    %206 = vmatpush1.bf16.xpose.msra.mxu0 %v170
    %207 = vmatprep.subr.bf16.mxu0 0
    %208 = vmatpush1.bf16.xpose.msra.mxu0 %v171
    %209 = vmatprep.subr.bf16.mxu0 0
    %210 = vmatpush1.bf16.xpose.msra.mxu0 %v172
    %211 = vmatprep.subr.bf16.mxu0 0
    %212 = vmatpush1.bf16.xpose.msra.mxu0 %v173
    %213 = vmatprep.subr.bf16.mxu0 0
    %214 = vmatpush1.bf16.xpose.msra.mxu0 %v174
    %215 = vmatprep.subr.bf16.mxu0 0
    %216 = vmatpush1.bf16.xpose.msra.mxu0 %v175
    %217 = vmatprep.subr.bf16.mxu0 0
    %218 = vmatpush1.bf16.xpose.msra.mxu0 %v176
    %219 = vmatprep.subr.bf16.mxu0 0
    %220 = vmatpush1.bf16.xpose.msra.mxu0 %v177
    %221 = vmatprep.subr.bf16.mxu0 0
    %222 = vmatpush1.bf16.xpose.msra.mxu0 %v178
    %223 = vmatprep.subr.bf16.mxu0 0
    %224 = vmatpush1.bf16.xpose.msra.mxu0 %v179
    %225 = vmatprep.subr.bf16.mxu0 0
    %226 = vmatpush1.bf16.xpose.msra.mxu0 %v180
    %227 = vmatprep.subr.bf16.mxu0 0
    %228 = vmatpush1.bf16.xpose.msra.mxu0 %v181
    %229 = vmatprep.subr.bf16.mxu0 0
    %230 = vmatpush1.bf16.xpose.msra.mxu0 %v182
    %231 = vmatprep.mubr.bf16.mxu0 0
    %232 = vmatmul.mubr.bf16.gmra.mrb[0].mxu0 %v99
    %v233 = vpop.f32.mrb[0].mxu0
    %v234 = vadd.f32 0.0, %v233
    %v235 = vpop.f32.mrb[0].mxu0
    %v236 = vadd.f32 0.0, %v235
    %v237 = vpop.f32.mrb[0].mxu0
    %v238 = vadd.f32 0.0, %v237
    %v239 = vpop.f32.mrb[0].mxu0
    %v240 = vadd.f32 0.0, %v239
    %241 = vmatprep.mubr.bf16.mxu0 0
    %242 = vmatmul.mubr.bf16.gmra.mrb[0].mxu0 %v100
    %v243 = vpop.f32.mrb[0].mxu0
    %v244 = vadd.f32 0.0, %v243
    %v245 = vpop.f32.mrb[0].mxu0
    %v246 = vadd.f32 0.0, %v245
    %v247 = vpop.f32.mrb[0].mxu0
    %v248 = vpop.f32.mrb[0].mxu0
    %249 = vdwg.mxu0
    %v250 = vld [vmem:[%s2] sm:$0x3]
    %v252 = vlaneseq
    %v253 = vshrl.u32 %v252, 7
    %v254 = vsub.s32 0, %v253
    %v255 = vrot.slane %v250, %v254
    %v256 = vlaneseq
    %v257 = vshrl.u32 %v256, 7
    %v258 = vsub.s32 1, %v257
    %v259 = vrot.slane %v250, %v258
    %v262 = vadd.f32 %v234, %v255
    %v263 = vadd.f32 %v236, %v259
    %v264 = vadd.f32 %v238, %v255
    %v265 = vadd.f32 %v240, %v259
    %v266 = vadd.f32 %v244, %v255
    %v267 = vadd.f32 %v246, %v259
    %268 = vst [vmem:[#allocation9] sm:$0xff] %v262
    %269 = vst [vmem:[#allocation9 + $0x8] sm:$0xff] %v263
    %270 = vst [vmem:[#allocation9 + $0x10] sm:$0xff] %v264
    %271 = vst [vmem:[#allocation9 + $0x18] sm:$0xff] %v265
    %272 = vst [vmem:[#allocation9 + $0x20] sm:$0xff] %v266
    %273 = vst [vmem:[#allocation9 + $0x28] sm:$0xff] %v267
    %v274 = vld [vmem:[#allocation2] sm:$0x3]
    %v275 = vadd.f32 %v234, %v238
    %v276 = vadd.f32 %v275, %v244
    %v277 = vrot.slane %v276, 4
    %v278 = vadd.f32 %v276, %v277
    %v279 = vrot.slane %v278, 2
    %v280 = vadd.f32 %v278, %v279
    %v281 = vrot.slane %v280, 1
    %v282 = vadd.f32 %v280, %v281
    %v283 = vadd.f32 %v236, %v240
    %v284 = vadd.f32 %v283, %v246
    %v285 = vrot.slane %v284, 4
    %v286 = vadd.f32 %v284, %v285
    %v287 = vrot.slane %v286, 2
    %v288 = vadd.f32 %v286, %v287
    %v289 = vrot.slane %v288, 1
    %v290 = vadd.f32 %v288, %v289
    %v293 = vcombine.low %v282, %v290
    %v295 = vunpack.c.l.s4 1966171168
    %v296 = vunpack.c.0.s8 %v295
    %v297 = vlaneseq
    %v298 = vshrl.u32 %v297, 7
    %v299 = vsub.s32 %v296, %v298
    %v300 = vrot.slane %v293, %v299
    %v302 = vunpack.c.l.s4 1966171168
    %v303 = vunpack.c.0.s8 %v302
    %v304 = vlaneseq
    %v305 = vshrl.u32 %v304, 7
    %v306 = vsub.s32 %v303, %v305
    %v307 = vrot.slane %v300, %v306
    %v309 = vadd.f32 %v274, %v307
    %v310 = vlaneseq
    %vm311 = vcmp.ge.s32.totalorder %v310, 0
    %vm312 = vcmp.lt.s32.totalorder %v310, 256
    %vm313 = vmand %vm311, %vm312
    %314 = vst.msk [vmem:[#allocation2] sm:$0x3] %vm313, %v309
    %v315 = vld [vmem:[#allocation3] sm:$0x3]
    %v316 = vmul.f32 %v234, %v234
    %v317 = vmul.f32 %v236, %v236
    %v318 = vmul.f32 %v238, %v238
    %v319 = vmul.f32 %v240, %v240
    %v320 = vmul.f32 %v244, %v244
    %v321 = vmul.f32 %v246, %v246
    %v322 = vadd.f32 %v316, %v318
    %v323 = vadd.f32 %v322, %v320
    %v324 = vrot.slane %v323, 4
    %v325 = vadd.f32 %v323, %v324
    %v326 = vrot.slane %v325, 2
    %v327 = vadd.f32 %v325, %v326
    %v328 = vrot.slane %v327, 1
    %v329 = vadd.f32 %v327, %v328
    %v330 = vadd.f32 %v317, %v319
    %v331 = vadd.f32 %v330, %v321
    %v332 = vrot.slane %v331, 4
    %v333 = vadd.f32 %v331, %v332
    %v334 = vrot.slane %v333, 2
    %v335 = vadd.f32 %v333, %v334
    %v336 = vrot.slane %v335, 1
    %v337 = vadd.f32 %v335, %v336
    %v340 = vcombine.low %v329, %v337
    %v342 = vunpack.c.l.s4 1966171168
    %v343 = vunpack.c.0.s8 %v342
    %v344 = vlaneseq
    %v345 = vshrl.u32 %v344, 7
    %v346 = vsub.s32 %v343, %v345
    %v347 = vrot.slane %v340, %v346
    %v349 = vunpack.c.l.s4 1966171168
    %v350 = vunpack.c.0.s8 %v349
    %v351 = vlaneseq
    %v352 = vshrl.u32 %v351, 7
    %v353 = vsub.s32 %v350, %v352
    %v354 = vrot.slane %v347, %v353
    %v356 = vadd.f32 %v315, %v354
    %357 = vst.msk [vmem:[#allocation3] sm:$0x3] %vm313, %v356
    // Predicated region
    $region26: #{tpu_custom_call.1} parent=1 // pred_check
      %p358 = pneg %p48
    $region27: #{tpu_custom_call.1} parent=1 // pred_check_branch
      %360 = sbr.rel (%p358) target = $region29
    $region28: #{tpu_custom_call.1} parent=1 // pred_region
      %v361 = vld [vmem:[#allocation2] sm:$0x3]
      %v362 = vrcp.pop 20.0
      %v363 = vmul.f32 %v361, %v362
      %v364 = vld [vmem:[#allocation3] sm:$0x3]
      %v365 = vmul.f32 %v363, 20.0
      %v366 = vmul.f32 %v365, %v363
      %v367 = vsub.f32 %v364, %v366
      %v368 = vmax.f32 %v367, 0.0
      %v369 = vrcp.pop 19.0
      %v370 = vmul.f32 %v368, %v369
      %v371 = vld [vmem:[%s2] sm:$0x3]
      %v372 = vadd.f32 %v363, %v371
      %373 = vst.msk [vmem:[#allocation10] sm:$0x3] %vm313, %v372
      %v374 = vrsqrt.pop %v370
      %v375 = vmul.f32 %v370, %v374
      %vm376 = vcmp.eq.f32.partialorder %v370, inf
      %v377 = vsel %vm376, %v370, %v375
      %vm378 = vcmp.eq.f32.partialorder %v370, 0.0
      %v379 = vand.u32 %v370, 2147483648
      %v380 = vsel %vm378, %v379, %v377
      %381 = vst.msk [vmem:[#allocation12] sm:$0x3] %vm313, %v380
    $region29: #{tpu_custom_call.1} parent=1 // pred_fallthru
      _
    // Predicated region
    $region30: #{tpu_custom_call.1} parent=1 // pred_check
      _
    $region31: #{tpu_custom_call.1} parent=1 // pred_check_branch
      %383 = sbr.rel (0) target = $region33
    $region32: #{tpu_custom_call.1} parent=1 // pred_region
      %s385 = ssub.s32 768, 768
      %386 = vsyncadd [#allocation6], %s385
      %s387 = sshll.u32 [#allocation9], 4
      %s388 = int_to_ptr.vmem [resolvable:$true] %s387
      %393 = dma.vmem_to_hbm [thread:$0]  %s388, 768, %s3, [#allocation6], 256, 256, 16
    $region33: #{tpu_custom_call.1} parent=1 // pred_fallthru
      _
    // Predicated region
    $region34: #{tpu_custom_call.1} parent=1 // pred_check
      _
    $region35: #{tpu_custom_call.1} parent=1 // pred_check_branch
      %395 = sbr.rel (0) target = $region37
    $region36: #{tpu_custom_call.1} parent=1 // pred_region
      %s397 = ssub.s32 32, 32
      %398 = vsyncadd [#allocation11], %s397
      %s400 = sshll.u32 [#allocation10], 4
      %s401 = int_to_ptr.vmem [resolvable:$true] %s400
      %403 = dma.vmem_to_hbm [thread:$0]  %s401, 32, %s4, [#allocation11]
    $region37: #{tpu_custom_call.1} parent=1 // pred_fallthru
      _
    // Predicated region
    $region38: #{tpu_custom_call.1} parent=1 // pred_check
      _
    $region39: #{tpu_custom_call.1} parent=1 // pred_check_branch
      %405 = sbr.rel (0) target = $region41
    $region40: #{tpu_custom_call.1} parent=1 // pred_region
      %s407 = ssub.s32 32, 32
      %408 = vsyncadd [#allocation11], %s407
      %s410 = sshll.u32 [#allocation12], 4
      %s411 = int_to_ptr.vmem [resolvable:$true] %s410
      %413 = dma.vmem_to_hbm [thread:$0]  %s411, 32, %s5, [#allocation11]
    $region41: #{tpu_custom_call.1} parent=1 // pred_fallthru
      _
    // Predicated region
    $region42: #{tpu_custom_call.1} parent=1 // pred_check
      _
    $region43: #{tpu_custom_call.1} parent=1 // pred_check_branch
      %415 = sbr.rel (0) target = $region45
    $region44: #{tpu_custom_call.1} parent=1 // pred_region
      %416 = dma.done [#allocation6], 768
    $region45: #{tpu_custom_call.1} parent=1 // pred_fallthru
      _
    // Predicated region
    $region46: #{tpu_custom_call.1} parent=1 // pred_check
      _
    $region47: #{tpu_custom_call.1} parent=1 // pred_check_branch
      %418 = sbr.rel (0) target = $region49
    $region48: #{tpu_custom_call.1} parent=1 // pred_region
      %419 = dma.done [#allocation11], 32
    $region49: #{tpu_custom_call.1} parent=1 // pred_fallthru
      _
    // Predicated region
    $region50: #{tpu_custom_call.1} parent=1 // pred_check
      _
    $region51: #{tpu_custom_call.1} parent=1 // pred_check_branch
      %421 = sbr.rel (0) target = $region53
    $region52: #{tpu_custom_call.1} parent=1 // pred_region
      %422 = dma.done [#allocation11], 32
    $region53: #{tpu_custom_call.1} parent=1 // pred_fallthru
      _
    %423 = vsyncpa [#allocation5], 1
    %424 = vsyncpa [#allocation8], 1
    %425 = vsyncpa [#allocation6], 1
    %426 = vsyncpa [#allocation11], 1

</llo_original>
